<compile_context>
chip_gen: v7x
topology: tpu7x:2x2x1
jax: 0.10.0
libtpu: 0.0.40
codegen_flags: <defaults>
</compile_context>

<pallas_src>
import functools

import jax
import jax.numpy as jnp
from jax.experimental import pallas as pl
from jax.experimental.pallas import tpu as pltpu

LANE = 128  # padded feature width (all true feature dims here are <= 128)


# --------------------------------- planning ---------------------------------- #

def _round_up(x, m):
    return ((x + m - 1) // m) * m


def _vmem_capacity_bytes():
    try:
        return int(pltpu.get_tpu_info().vmem_capacity_bytes)
    except Exception:
        return 64 << 20  # conservative fallback (v7x per-core VMEM)


def plan_gcn(num_nodes, *, force_stream=False):
    """Pick execution mode, padding and tiles from the node count."""
    vmem = _vmem_capacity_bytes()
    if not force_stream:
        n_pad = _round_up(max(num_nodes, 1), LANE)
        a_bytes = n_pad * n_pad * 2  # bf16 A_hat
        # Fused (A_hat VMEM-resident across all layers) if it fits with margin
        # for H buffers, output, weights and compiler temporaries.
        if a_bytes + (32 << 20) <= vmem:
            vmem_limit = min(vmem - (2 << 20), a_bytes + (30 << 20))
            return dict(mode="fused", n_pad=n_pad, tm=None, tk=None,
                        vmem_limit=int(vmem_limit))
    # Streaming: tile A_hat over (row tiles, contraction chunks).
    n_pad = _round_up(max(num_nodes, 1), 512)
    tm = 512
    if n_pad % 2048 == 0:
        tk = 2048
    elif n_pad % 1024 == 0:
        tk = 1024
    else:
        tk = 512
    vmem_limit = min(48 << 20, vmem - (2 << 20))
    return dict(mode="stream", n_pad=n_pad, tm=tm, tk=tk,
                vmem_limit=int(vmem_limit))


# ------------------------------ Pallas kernels ------------------------------- #

def _make_fused_kernel(n_layers):
    """All conv layers + Linear decoder in one kernel, A_hat resident in VMEM.

    refs: a_hbm, x, (w,b)*n_layers, w_dec, b_dec, out, a_vmem, sem
    """

    def kernel(*refs):
        a_hbm, x_ref = refs[0], refs[1]
        wb = refs[2:2 + 2 * n_layers]
        wd_ref, bd_ref, out_ref, a_vmem, sem = refs[2 + 2 * n_layers:]

        # Single HBM -> VMEM copy of A_hat; reused by every layer below.
        cp = pltpu.make_async_copy(a_hbm, a_vmem, sem)
        cp.start()
        cp.wait()

        h = x_ref[...]  # bf16 (n_pad, LANE)
        for l in range(n_layers):
            w_ref, b_ref = wb[2 * l], wb[2 * l + 1]
            # N^2 aggregation: bf16 MXU inputs, f32 accumulation.
            agg = jnp.dot(a_vmem[...], h, preferred_element_type=jnp.float32)
            # Feature transform: bf16 MXU inputs, f32 bias add.
            z = jnp.dot(agg.astype(jnp.bfloat16), w_ref[...],
                        preferred_element_type=jnp.float32) + b_ref[...]
            if l < n_layers - 1:
                h = jnp.maximum(z, 0.0).astype(jnp.bfloat16)
            else:
                # Last conv (no ReLU) -> fused Linear decoder.
                out = jnp.dot(z.astype(jnp.bfloat16), wd_ref[...],
                              preferred_element_type=jnp.float32) + bd_ref[...]
                out_ref[...] = out.astype(out_ref.dtype)

    return kernel


def _gcn_fused(a_hat, x_pad, ws, bs, wd, bd, *, vmem_limit):
    n_pad = a_hat.shape[0]
    n_layers = len(ws)

    operands = [a_hat, x_pad]
    in_specs = [pl.BlockSpec(memory_space=pl.ANY),               # A_hat in HBM
                pl.BlockSpec((n_pad, LANE), lambda i: (0, 0))]   # X resident
    for w, b in zip(ws, bs):
        operands += [w, b]
        in_specs += [pl.BlockSpec((LANE, LANE), lambda i: (0, 0)),
                     pl.BlockSpec((1, LANE), lambda i: (0, 0))]
    operands += [wd, bd]
    in_specs += [pl.BlockSpec((LANE, LANE), lambda i: (0, 0)),
                 pl.BlockSpec((1, LANE), lambda i: (0, 0))]

    return pl.pallas_call(
        _make_fused_kernel(n_layers),
        out_shape=jax.ShapeDtypeStruct((n_pad, LANE), jnp.float32),
        grid=(1,),
        in_specs=in_specs,
        out_specs=pl.BlockSpec((n_pad, LANE), lambda i: (0, 0)),
        scratch_shapes=[pltpu.VMEM((n_pad, n_pad), jnp.bfloat16),
                        pltpu.SemaphoreType.DMA(())],
        compiler_params=pltpu.CompilerParams(
            dimension_semantics=("arbitrary",),
            vmem_limit_bytes=int(vmem_limit)),
    )(*operands)


def _make_stream_kernel(apply_relu, fuse_decoder, tk):
    """One GCNConv layer (optionally fused with the decoder), streamed A_hat.

    Grid: (row tiles of A_hat [parallel], contraction chunks [arbitrary]).
    """

    def body(a_ref, h_ref, w_ref, b_ref, wd_ref, bd_ref, out_ref, acc_ref):
        k = pl.program_id(1)

        @pl.when(k == 0)
        def _():
            acc_ref[...] = jnp.zeros_like(acc_ref)

        # H is fully resident in VMEM; slice the contraction chunk in-kernel.
        start = pl.multiple_of(k * tk, tk)
        acc_ref[...] += jnp.dot(a_ref[...], h_ref[pl.ds(start, tk), :],
                                preferred_element_type=jnp.float32)

        @pl.when(k == pl.num_programs(1) - 1)
        def _():
            # Epilogue: bf16 MXU matmuls, f32 bias / ReLU.
            z = jnp.dot(acc_ref[...].astype(jnp.bfloat16), w_ref[...],
                        preferred_element_type=jnp.float32) + b_ref[...]
            if apply_relu:
                z = jnp.maximum(z, 0.0)
            if fuse_decoder:
                z = jnp.dot(z.astype(jnp.bfloat16), wd_ref[...],
                            preferred_element_type=jnp.float32) + bd_ref[...]
            out_ref[...] = z.astype(out_ref.dtype)

    if fuse_decoder:
        def kernel(a_ref, h_ref, w_ref, b_ref, wd_ref, bd_ref, out_ref, acc_ref):
            body(a_ref, h_ref, w_ref, b_ref, wd_ref, bd_ref, out_ref, acc_ref)
    else:
        def kernel(a_ref, h_ref, w_ref, b_ref, out_ref, acc_ref):
            body(a_ref, h_ref, w_ref, b_ref, None, None, out_ref, acc_ref)
    return kernel


def _gcn_stream_layer(a_hat, h, w, b, wd=None, bd=None, *, apply_relu,
                      out_dtype, tm, tk, vmem_limit):
    n_pad = a_hat.shape[0]
    fuse_decoder = wd is not None
    grid = (n_pad // tm, n_pad // tk)

    in_specs = [
        pl.BlockSpec((tm, tk), lambda i, k: (i, k)),       # A tile (streamed)
        pl.BlockSpec((n_pad, LANE), lambda i, k: (0, 0)),  # H fully resident
        pl.BlockSpec((LANE, LANE), lambda i, k: (0, 0)),   # W (bf16)
        pl.BlockSpec((1, LANE), lambda i, k: (0, 0)),      # bias (f32)
    ]
    operands = [a_hat, h, w, b]
    if fuse_decoder:
        in_specs += [pl.BlockSpec((LANE, LANE), lambda i, k: (0, 0)),
                     pl.BlockSpec((1, LANE), lambda i, k: (0, 0))]
        operands += [wd, bd]

    return pl.pallas_call(
        _make_stream_kernel(apply_relu, fuse_decoder, tk),
        out_shape=jax.ShapeDtypeStruct((n_pad, LANE), out_dtype),
        grid=grid,
        in_specs=in_specs,
        out_specs=pl.BlockSpec((tm, LANE), lambda i, k: (i, 0)),
        scratch_shapes=[pltpu.VMEM((tm, LANE), jnp.float32)],
        compiler_params=pltpu.CompilerParams(
            dimension_semantics=("parallel", "arbitrary"),
            vmem_limit_bytes=int(vmem_limit)),
    )(*operands)


# --------------------------------- helpers ------------------------------------ #

def _pad2(x, rows, cols, dtype=None):
    out = jnp.zeros((rows, cols), dtype or x.dtype)
    return out.at[: x.shape[0], : x.shape[1]].set(x.astype(out.dtype))


def build_normalized_adjacency(edge_index, *, num_nodes, n_pad):
    """Dense PyG gcn_norm adjacency (with self loops), zero-padded, bf16."""
    # TODO(synk): data-dependent scatter-add has no clean Pallas equivalent;
    # for large sparse graphs switch to a scalar-prefetched SpMM formulation.
    loops = jnp.arange(num_nodes, dtype=edge_index.dtype)
    row = jnp.concatenate([edge_index[0], loops])   # sources
    col = jnp.concatenate([edge_index[1], loops])   # targets
    deg = jnp.zeros((num_nodes,), jnp.float32).at[col].add(1.0)
    deg_inv_sqrt = jnp.where(deg > 0, jax.lax.rsqrt(deg), 0.0)
    norm = deg_inv_sqrt[row] * deg_inv_sqrt[col]
    a_hat = jnp.zeros((n_pad, n_pad), jnp.float32).at[col, row].add(norm)
    return a_hat.astype(jnp.bfloat16)


# --------------------------------- forward ------------------------------------ #

def gcn_nc_forward(params, x, a_hat, *, two_layers, num_nodes, num_classes, plan):
    """GCN_NC forward: GCN encoder (2 or 3 GCNConv layers) + Linear decoder."""
    n_pad = a_hat.shape[0]

    if two_layers:
        convs = [(params["w1b"], params["b1b"]), (params["w2b"], params["b2b"])]
    else:
        convs = [(params["w1"], params["b1"]), (params["w2"], params["b2"]),
                 (params["w3"], params["b3"])]

    # The layout assumes all true feature / hidden / class dims fit in 128 lanes.
    assert x.shape[1] <= LANE
    for w, _ in convs:
        assert w.shape[0] <= LANE and w.shape[1] <= LANE
    assert params["w_dec"].shape[0] <= LANE and params["w_dec"].shape[1] <= LANE

    # Node features padded to LANE; bf16 only as MXU input.
    x_pad = jnp.zeros((n_pad, LANE), jnp.float32)
    x_pad = x_pad.at[: x.shape[0], : x.shape[1]].set(x).astype(jnp.bfloat16)

    ws = [_pad2(w, LANE, LANE, jnp.bfloat16) for w, _ in convs]
    bs = [_pad2(b.reshape(1, -1), 1, LANE, jnp.float32) for _, b in convs]
    wd = _pad2(params["w_dec"], LANE, LANE, jnp.bfloat16)
    bd = _pad2(params["b_dec"].reshape(1, -1), 1, LANE, jnp.float32)

    if plan["mode"] == "fused":
        out = _gcn_fused(a_hat, x_pad, ws, bs, wd, bd,
                         vmem_limit=plan["vmem_limit"])
    else:
        h = x_pad
        n_layers = len(convs)
        for l in range(n_layers):
            last = l == n_layers - 1
            if last:
                h = _gcn_stream_layer(a_hat, h, ws[l], bs[l], wd, bd,
                                      apply_relu=False, out_dtype=jnp.float32,
                                      tm=plan["tm"], tk=plan["tk"],
                                      vmem_limit=plan["vmem_limit"])
            else:
                h = _gcn_stream_layer(a_hat, h, ws[l], bs[l],
                                      apply_relu=True, out_dtype=jnp.bfloat16,
                                      tm=plan["tm"], tk=plan["tk"],
                                      vmem_limit=plan["vmem_limit"])
        out = h

    return out[:num_nodes, :num_classes]


# ----------------------------- pure-JAX reference ------------------------------ #

def gcn_nc_reference(params, x, edge_index, *, two_layers):
    n = x.shape[0]
    loops = jnp.arange(n, dtype=edge_index.dtype)
    row = jnp.concatenate([edge_index[0], loops])
    col = jnp.concatenate([edge_index[1], loops])
    deg = jnp.zeros((n,), jnp.float32).at[col].add(1.0)
    dis = jnp.where(deg > 0, 1.0 / jnp.sqrt(deg), 0.0)
    a = jnp.zeros((n, n), jnp.float32).at[col, row].add(dis[row] * dis[col])
    if two_layers:
        convs = [(params["w1b"], params["b1b"]), (params["w2b"], params["b2b"])]
    else:
        convs = [(params["w1"], params["b1"]), (params["w2"], params["b2"]),
                 (params["w3"], params["b3"])]
    h = x
    for l, (w, b) in enumerate(convs):
        h = a @ (h @ w) + b
        if l < len(convs) - 1:
            h = jnp.maximum(h, 0.0)
    return h @ params["w_dec"] + params["b_dec"]


# ----------------------- deterministic parameter init -------------------------- #

def _glorot(key, fan_in, fan_out):
    limit = jnp.sqrt(6.0 / (fan_in + fan_out))
    return jax.random.uniform(key, (fan_in, fan_out), jnp.float32, -limit, limit)


def init_gcn_nc_params(key, in_features, hidden_channels, embedding_size,
                       num_classes):
    ks = jax.random.split(key, 8)
    params = {
        # 3-layer encoder path
        "w1": _glorot(ks[0], in_features, hidden_channels),
        "b1": jnp.zeros((hidden_channels,), jnp.float32),
        "w2": _glorot(ks[1], hidden_channels, 48),
        "b2": jnp.zeros((48,), jnp.float32),
        "w3": _glorot(ks[2], 48, embedding_size),
        "b3": jnp.zeros((embedding_size,), jnp.float32),
        # 2-layer encoder path
        "w1b": _glorot(ks[3], in_features, hidden_channels),
        "b1b": jnp.zeros((hidden_channels,), jnp.float32),
        "w2b": _glorot(ks[4], hidden_channels, embedding_size),
        "b2b": jnp.zeros((embedding_size,), jnp.float32),
    }
    bound = 1.0 / jnp.sqrt(jnp.float32(embedding_size))
    params["w_dec"] = jax.random.uniform(
        ks[5], (embedding_size, num_classes), jnp.float32, -bound, bound)
    params["b_dec"] = jax.random.uniform(
        ks[6], (num_classes,), jnp.float32, -bound, bound)
    return params


# ------------------------------------ main ------------------------------------- #

if __name__ == "__main__":
    F = 8
    hidden_channels = 32
    embedding_size = 16
    num_classes = 8

    key = jax.random.PRNGKey(0)
    k_x1, k_x2, k_p = jax.random.split(key, 3)
    params = init_gcn_nc_params(k_p, F, hidden_channels, embedding_size,
                                num_classes)

    def ring_edges(n):
        src = jnp.arange(n, dtype=jnp.int32)
        dst = (src + 1) % n
        return jnp.concatenate(
            [jnp.stack([src, dst], 0), jnp.stack([dst, src], 0)], axis=1)

    def run_case(n, x_key, *, two_layers, force_stream):
        x = jax.random.normal(x_key, (n, F), jnp.float32)
        edge_index = ring_edges(n)
        plan = plan_gcn(n, force_stream=force_stream)
        # A_hat built once (outside the forward) and reused across calls.
        a_hat = jax.jit(functools.partial(
            build_normalized_adjacency, num_nodes=n, n_pad=plan["n_pad"]))(edge_index)
        fwd = jax.jit(functools.partial(
            gcn_nc_forward, two_layers=two_layers, num_nodes=n,
            num_classes=num_classes, plan=plan))
        out = fwd(params, x, a_hat)
        jax.block_until_ready(out)
        ref = gcn_nc_reference(params, x, edge_index, two_layers=two_layers)
        assert out.shape == (n, num_classes)
        assert bool(jnp.all(jnp.isfinite(out)))
        # bf16 MXU inputs + f32 accumulation -> generous but meaningful tolerance.
        assert bool(jnp.allclose(out, ref, rtol=1e-1, atol=1e-1)), (
            "max abs err = %f" % float(jnp.max(jnp.abs(out - ref))))

    # Case 1: small graph -> fused kernel (A_hat resident, 3-layer encoder).
    run_case(32, k_x1, two_layers=False, force_stream=False)
    # Case 2: force the streaming (row-tiled) path and the 2-layer encoder branch.
    run_case(1200, k_x2, two_layers=True, force_stream=True)

    print("KERNEL_OK")
</pallas_src>

<mosaic_0001>
module attributes {stable_mosaic.version = 11 : i64} {
  func.func private @main(%arg0: i32) attributes {dimension_semantics = [#tpu.dimension_semantics<core_parallel>], iteration_bounds = array<i64: 2>, tpu.core_type = #tpu.core_type<sc_scalar_subcore>, window_params = []} {
    return
  }
}

module attributes {stable_mosaic.version = 11 : i64} {
  func.func private @main(%arg0: i32) attributes {dimension_semantics = [#tpu.dimension_semantics<core_parallel>], iteration_bounds = array<i64: 2>, tpu.core_type = #tpu.core_type<sc_scalar_subcore>, window_params = []} {
    return
  }
}

</mosaic_0001>

<llo_original>
// kernel: mul.1
$region0: #{mul.1}
  #allocation0 [shape = 's32[1]{0}', space=sflag, size = 0x4, scoped, tag = 'scoped memory for mul.1']
  %s0 = inlined_call_operand.vmem [shape: f32[96], index: 0, kind: input, shape index: {}]
  %s1 = inlined_call_operand.vmem [shape: f32[96], index: 1, kind: input, shape index: {}]
  %s2 = inlined_call_operand.vmem [shape: f32[96], index: 2, kind: output, shape index: {}]
  %v3 = vld [vmem:[%s0] sm:$0x1]
  %v4 = vld [vmem:[%s1] sm:$0x1]
  %5 = xla_tuple %v3, %v4
  %6 = xla_tuple %5
  %v7 = vmul.f32 %v3, %v4
  %8 = xla_tuple %v7
  %9 = vst [vmem:[%s2] sm:$0x1] %v7

</llo_original>
